<compile_context>
chip_gen: v7x
topology: tpu7x:2x2x1
jax: 0.10.0
libtpu: 0.0.40
codegen_flags: <defaults>
</compile_context>

<pallas_src>
import jax
import jax.numpy as jnp
from jax.experimental import pallas as pl
from jax.experimental.pallas import tpu as pltpu


# ----------------------------------------------------------------------------- kernel

def _make_ffn_kernel(approx_sigmoid):
    def kernel(x_ref, w1_ref, b1_ref, w2_ref, b2_ref, o_ref):
        # x_ref: (tm, dim), w1_ref: (dim, hid_p), b1_ref: (1, hid_p),
        # w2_ref: (hid_p, dim_p), b2_ref: (1, dim_p), o_ref: (tm, dim_p)
        h = jnp.dot(x_ref[...], w1_ref[...], preferred_element_type=jnp.float32)
        h = h + b1_ref[...].astype(jnp.float32)
        # SiLU (swish): h * sigmoid(h).
        if approx_sigmoid:
            # exp -> EUP, approximate reciprocal -> EUP; only the adds/mul hit the VALU.
            s = pl.reciprocal(1.0 + jnp.exp(-h), approx=True)
        else:
            s = jax.nn.sigmoid(h)
        h = h * s
        # Dropout(p=0.0) is the identity on the forward pass -> nothing to do.
        y = jnp.dot(h.astype(w2_ref.dtype), w2_ref[...],
                    preferred_element_type=jnp.float32)
        y = y + b2_ref[...].astype(jnp.float32)
        o_ref[...] = y.astype(o_ref.dtype)
    return kernel


# ----------------------------------------------------------------------------- helpers

def _round_up(v, m):
    return (v + m - 1) // m * m


def _vmem_budget_bytes():
    """One number used both for tm selection and vmem_limit_bytes (~0.75 x VMEM)."""
    cap = None
    try:
        info = pltpu.get_tpu_info()
        cap = getattr(info, "vmem_capacity_bytes", None)
    except Exception:
        cap = None
    if not cap:
        cap = 64 * 1024 * 1024  # conservative (v7x per-TC VMEM)
    return max(16 * 1024 * 1024, int(cap * 0.75))


def _single_buffer_weights_supported():
    """Capability probe: does this JAX build accept pl.Buffered(1) on a BlockSpec?"""
    try:
        pl.BlockSpec((8, 128), lambda i: (0, 0), pipeline_mode=pl.Buffered(1))
        return True
    except Exception:
        return False


def _pick_tm(M, dim_p, hid_p, x_item, w_item, out_item, budget, weight_buffers):
    """Largest row tile (2048/1024/.../8, multiple of 8) fitting the VMEM budget,
    capped so the parallel row grid has >= 2 steps (v7x megacore)."""
    cap = _round_up(M, 8)
    if M > 8:
        cap = min(cap, _round_up(pl.cdiv(M, 2), 8))
    # Resident weights + biases (x weight_buffers buffering).
    weights = weight_buffers * ((dim_p * hid_p + hid_p * dim_p) * w_item
                                + (hid_p + dim_p) * 4)
    for tm in (2048, 1024, 512, 256, 128, 64, 32, 16, 8):
        tm_eff = min(tm, cap)
        per_tile = (2 * tm_eff * dim_p * x_item      # x tile, double-buffered
                    + 2 * tm_eff * dim_p * out_item  # out tile, double-buffered
                    + tm_eff * hid_p * 4             # h intermediate (f32)
                    + tm_eff * dim_p * 4)            # y intermediate (f32)
        if weights + per_tile <= budget:
            return tm_eff
    return min(8, cap)


def _build_ffn_call(M, dim, dim_p, hid_p, tm, out_dtype, vmem_limit,
                    single_buffer_weights, approx_sigmoid):
    if single_buffer_weights:
        w_kwargs = dict(pipeline_mode=pl.Buffered(1))
    else:
        w_kwargs = {}
    grid_spec = pltpu.PrefetchScalarGridSpec(
        num_scalar_prefetch=0,
        grid=(pl.cdiv(M, tm),),
        in_specs=[
            pl.BlockSpec((tm, dim), lambda i: (i, 0)),                   # x rows (unpadded dim)
            pl.BlockSpec((dim, hid_p), lambda i: (0, 0), **w_kwargs),    # W1
            pl.BlockSpec((1, hid_p), lambda i: (0, 0), **w_kwargs),      # b1
            pl.BlockSpec((hid_p, dim_p), lambda i: (0, 0), **w_kwargs),  # W2
            pl.BlockSpec((1, dim_p), lambda i: (0, 0), **w_kwargs),      # b2
        ],
        out_specs=pl.BlockSpec((tm, dim_p), lambda i: (i, 0)),           # lane-dense stores
    )
    return pl.pallas_call(
        _make_ffn_kernel(approx_sigmoid),
        out_shape=jax.ShapeDtypeStruct((M, dim_p), out_dtype),
        grid_spec=grid_spec,
        compiler_params=pltpu.CompilerParams(
            # Row axis is embarrassingly parallel -> megacore sharding on v7x.
            dimension_semantics=("parallel",),
            vmem_limit_bytes=vmem_limit,
        ),
    )


# ----------------------------------------------------------------------------- wrapper

def feed_forward(x, w1, b1, w2, b2, *, tm=None, mxu_dtype=jnp.bfloat16,
                 out_dtype=None, vmem_budget_bytes=None):
    """x: (B, N, dim). w1: (dim, hidden), b1: (hidden,), w2: (hidden, dim), b2: (dim,).

    mxu_dtype=jnp.bfloat16 (default): bf16 operands on the MXU with f32 accumulation
    (~1e-2-level deviation from the f32 reference).  mxu_dtype=None: exact f32 path.
    """
    B, N, dim = x.shape
    hidden = w1.shape[1]
    assert w1.shape == (dim, hidden) and w2.shape == (hidden, dim)
    assert b1.shape == (hidden,) and b2.shape == (dim,)

    if out_dtype is None:
        out_dtype = x.dtype
    approx_sigmoid = mxu_dtype is not None
    if mxu_dtype is not None:
        x = x.astype(mxu_dtype)
        w1 = w1.astype(mxu_dtype)
        w2 = w2.astype(mxu_dtype)

    M = B * N
    dim_p = _round_up(dim, 128)   # lane-align padded feature dims (weights/output only)
    hid_p = _round_up(hidden, 128)

    budget = vmem_budget_bytes if vmem_budget_bytes is not None else _vmem_budget_bytes()
    single_buf = _single_buffer_weights_supported()
    weight_buffers = 1 if single_buf else 2

    if tm is None:
        tm = _pick_tm(M, dim_p, hid_p,
                      x_item=jnp.dtype(x.dtype).itemsize,
                      w_item=jnp.dtype(w1.dtype).itemsize,
                      out_item=jnp.dtype(out_dtype).itemsize,
                      budget=budget, weight_buffers=weight_buffers)

    # No wrapper-side pad of x: flatten only (row-major reshape is free).
    x2d = x.reshape(M, dim)
    # Weights/biases are padded once (tiny, amortizable at load time).
    w1_p = jnp.pad(w1, ((0, 0), (0, hid_p - hidden)))
    w2_p = jnp.pad(w2, ((0, hid_p - hidden), (0, dim_p - dim)))
    b1_p = jnp.pad(b1, (0, hid_p - hidden)).astype(jnp.float32).reshape(1, hid_p)
    b2_p = jnp.pad(b2, (0, dim_p - dim)).astype(jnp.float32).reshape(1, dim_p)

    call = _build_ffn_call(M, dim, dim_p, hid_p, tm, out_dtype, budget,
                           single_buffer_weights=single_buf,
                           approx_sigmoid=approx_sigmoid)
    out2d = call(x2d, w1_p, b1_p, w2_p, b2_p)

    # Padded hidden/output columns are exactly zero contributions; slice them away.
    return out2d[:, :dim].reshape(B, N, dim)


# ----------------------------------------------------------------------------- init + demo

def _init_params(key, dim, hidden_dim, dtype=jnp.float32):
    # Mimic torch.nn.Linear default init: U(-1/sqrt(fan_in), 1/sqrt(fan_in)).
    k1, k2, k3, k4 = jax.random.split(key, 4)
    lim1 = 1.0 / (dim ** 0.5)
    lim2 = 1.0 / (hidden_dim ** 0.5)
    # Stored pre-transposed as (in, out) relative to PyTorch's (out, in).
    w1 = jax.random.uniform(k1, (dim, hidden_dim), dtype, -lim1, lim1)
    b1 = jax.random.uniform(k2, (hidden_dim,), dtype, -lim1, lim1)
    w2 = jax.random.uniform(k3, (hidden_dim, dim), dtype, -lim2, lim2)
    b2 = jax.random.uniform(k4, (dim,), dtype, -lim2, lim2)
    return w1, b1, w2, b2


if __name__ == "__main__":
    # Small transformer-token shapes consistent with the module.
    B, N, dim, hidden_dim = 2, 8, 32, 64

    key = jax.random.PRNGKey(0)
    kx, kp = jax.random.split(key)
    x = jax.random.normal(kx, (B, N, dim), jnp.float32)
    w1, b1, w2, b2 = _init_params(kp, dim, hidden_dim)

    # Pure-JAX reference (matches the PyTorch forward with dropout=0.0).
    h_ref = x @ w1 + b1
    h_ref = h_ref * jax.nn.sigmoid(h_ref)
    y_ref = h_ref @ w2 + b2

    # Default bf16 MXU path (f32 accumulation): ~1e-2-level tolerance vs f32 reference.
    y = jax.block_until_ready(feed_forward(x, w1, b1, w2, b2))
    assert y.shape == (B, N, dim)
    assert jnp.allclose(y, y_ref, atol=5e-2, rtol=5e-2), "bf16 mismatch vs reference"

    # Exact f32 path (matches PyTorch numerics).
    y_f32 = jax.block_until_ready(feed_forward(x, w1, b1, w2, b2, mxu_dtype=None))
    assert y_f32.shape == (B, N, dim)
    assert jnp.allclose(y_f32, y_ref, atol=1e-5, rtol=1e-5), "f32 mismatch vs reference"

    # TODO(synk): nn.Dropout with p>0 (training-mode RNG masking) is not implemented;
    # the module's default p=0.0 makes it the identity on the forward pass.
    print("KERNEL_OK")
</pallas_src>

<mosaic_0001>
module attributes {stable_mosaic.version = 11 : i64} {
  func.func @kernel(%arg0: i32, %arg1: memref<8x32xbf16, #tpu.memory_space<vmem>>, %arg2: memref<32x128xbf16, #tpu.memory_space<vmem>>, %arg3: memref<1x128xf32, #tpu.memory_space<vmem>>, %arg4: memref<128x128xbf16, #tpu.memory_space<vmem>>, %arg5: memref<1x128xf32, #tpu.memory_space<vmem>>, %arg6: memref<8x128xf32, #tpu.memory_space<vmem>>) attributes {dimension_semantics = [#tpu.dimension_semantics<parallel>], iteration_bounds = array<i64: 2>, scalar_prefetch = 0 : i64, scratch_operands = 0 : i64, tpu.core_type = #tpu.core_type<tc>, window_params = [{transform_indices = @transform_0, window_bounds = array<i64: 8, 32>}, {pipeline_mode = #tpu.pipeline_mode<synchronous>, transform_indices = @transform_1, window_bounds = array<i64: 32, 128>}, {pipeline_mode = #tpu.pipeline_mode<synchronous>, transform_indices = @transform_2, window_bounds = array<i64: 1, 128>}, {pipeline_mode = #tpu.pipeline_mode<synchronous>, transform_indices = @transform_3, window_bounds = array<i64: 128, 128>}, {pipeline_mode = #tpu.pipeline_mode<synchronous>, transform_indices = @transform_4, window_bounds = array<i64: 1, 128>}, {transform_indices = @transform_5, window_bounds = array<i64: 8, 128>}]} {
    %c0 = arith.constant 0 : index
    %c0_0 = arith.constant 0 : index
    %0 = vector.load %arg1[%c0, %c0_0] : memref<8x32xbf16, #tpu.memory_space<vmem>>, vector<8x32xbf16>
    %c0_1 = arith.constant 0 : index
    %c0_2 = arith.constant 0 : index
    %1 = vector.load %arg2[%c0_1, %c0_2] : memref<32x128xbf16, #tpu.memory_space<vmem>>, vector<32x128xbf16>
    %cst = arith.constant dense<0.000000e+00> : vector<8x128xf32>
    %2 = tpu.matmul %0, %1, %cst {dimension_numbers = #tpu.dot_dimension_numbers<[1], [0], [0], [1], [0, 0, 1, 1], [], []>} : vector<8x32xbf16>, vector<32x128xbf16>, vector<8x128xf32> -> vector<8x128xf32>
    %c0_3 = arith.constant 0 : index
    %c0_4 = arith.constant 0 : index
    %3 = vector.load %arg3[%c0_3, %c0_4] : memref<1x128xf32, #tpu.memory_space<vmem>>, vector<1x128xf32>
    %4 = vector.broadcast %3 : vector<1x128xf32> to vector<8x128xf32>
    %5 = arith.addf %2, %4 : vector<8x128xf32>
    %cst_5 = arith.constant 0.000000e+00 : f32
    %6 = vector.broadcast %cst_5 : f32 to vector<8x128xf32>
    %7 = arith.subf %6, %5 : vector<8x128xf32>
    %8 = math.exp %7 : vector<8x128xf32>
    %cst_6 = arith.constant 1.000000e+00 : f32
    %9 = vector.broadcast %cst_6 : f32 to vector<8x128xf32>
    %10 = arith.addf %9, %8 : vector<8x128xf32>
    %11 = tpu.reciprocal %10 {approx = true} : vector<8x128xf32> -> vector<8x128xf32>
    %12 = arith.mulf %5, %11 : vector<8x128xf32>
    %13 = arith.truncf %12 : vector<8x128xf32> to vector<8x128xbf16>
    %c0_7 = arith.constant 0 : index
    %c0_8 = arith.constant 0 : index
    %14 = vector.load %arg4[%c0_7, %c0_8] : memref<128x128xbf16, #tpu.memory_space<vmem>>, vector<128x128xbf16>
    %cst_9 = arith.constant dense<0.000000e+00> : vector<8x128xf32>
    %15 = tpu.matmul %13, %14, %cst_9 {dimension_numbers = #tpu.dot_dimension_numbers<[1], [0], [0], [1], [0, 0, 1, 1], [], []>} : vector<8x128xbf16>, vector<128x128xbf16>, vector<8x128xf32> -> vector<8x128xf32>
    %c0_10 = arith.constant 0 : index
    %c0_11 = arith.constant 0 : index
    %16 = vector.load %arg5[%c0_10, %c0_11] : memref<1x128xf32, #tpu.memory_space<vmem>>, vector<1x128xf32>
    %17 = vector.broadcast %16 : vector<1x128xf32> to vector<8x128xf32>
    %18 = arith.addf %15, %17 : vector<8x128xf32>
    %c0_12 = arith.constant 0 : index
    %c0_13 = arith.constant 0 : index
    %19 = vector.load %arg6[%c0_12, %c0_13] : memref<8x128xf32, #tpu.memory_space<vmem>>, vector<8x128xf32>
    tpu.vector_store %arg6[%c0_12, %c0_13], %18 {strides = array<i32>} : memref<8x128xf32, #tpu.memory_space<vmem>>, vector<8x128xf32>,
    return
  }
  func.func @transform_0(%arg0: i32) -> (i32, i32) {
    %c0_i32 = arith.constant 0 : i32
    %c0_i32_0 = arith.constant 0 : i32
    return %arg0, %c0_i32 : i32, i32
  }
  func.func @transform_1(%arg0: i32) -> (i32, i32) {
    %c0_i32 = arith.constant 0 : i32
    %c0_i32_0 = arith.constant 0 : i32
    %c0_i32_1 = arith.constant 0 : i32
    return %c0_i32, %c0_i32_0 : i32, i32
  }
  func.func @transform_2(%arg0: i32) -> (i32, i32) {
    %c0_i32 = arith.constant 0 : i32
    %c0_i32_0 = arith.constant 0 : i32
    %c0_i32_1 = arith.constant 0 : i32
    return %c0_i32, %c0_i32_0 : i32, i32
  }
  func.func @transform_3(%arg0: i32) -> (i32, i32) {
    %c0_i32 = arith.constant 0 : i32
    %c0_i32_0 = arith.constant 0 : i32
    %c0_i32_1 = arith.constant 0 : i32
    return %c0_i32, %c0_i32_0 : i32, i32
  }
  func.func @transform_4(%arg0: i32) -> (i32, i32) {
    %c0_i32 = arith.constant 0 : i32
    %c0_i32_0 = arith.constant 0 : i32
    %c0_i32_1 = arith.constant 0 : i32
    return %c0_i32, %c0_i32_0 : i32, i32
  }
  func.func @transform_5(%arg0: i32) -> (i32, i32) {
    %c0_i32 = arith.constant 0 : i32
    %c0_i32_0 = arith.constant 0 : i32
    return %arg0, %c0_i32 : i32, i32
  }
}

</mosaic_0001>

<llo_original>
// kernel: tpu_custom_call.1
$region0: #{tpu_custom_call.1}
  #allocation0 [shape = 'u32[]', space=smem, size = 0x4, offset = 0x4, fixed_abs, tag = 'smem constant byte address 0x4 - core index']
  #allocation1 [shape = 'u32[144,128]{1,0:T(1,128)}', space=vmem, size = 0x12000, scoped, tag = 'internal scratch']
  %s0 = inlined_call_operand.hbm [shape: bf16[16,32], index: 0, kind: input, shape index: {}]
  %s1 = inlined_call_operand.hbm [shape: bf16[32,128], index: 1, kind: input, shape index: {}]
  %s2 = inlined_call_operand.vmem [shape: f32[1,128], index: 2, kind: input, shape index: {}]
  %s3 = inlined_call_operand.hbm [shape: bf16[128,128], index: 3, kind: input, shape index: {}]
  %s4 = inlined_call_operand.vmem [shape: f32[1,128], index: 4, kind: input, shape index: {}]
  %s5 = inlined_call_operand.hbm [shape: f32[16,128], index: 5, kind: output, shape index: {}]
  %s6 = sld [smem:[#allocation0]]
  $region65: #{tpu_custom_call.1} parent=0
    _
  %s8 = ssub.s32 1, %s6
  %s9 = scalar_select 0, %s8, %s6
  $region1: #{tpu_custom_call.1} parent=0
    #allocation2 [shape = 'u8[4096]{0}', space=vmem, size = 0x1000, scoped, tag = 'input window, operand 0']
    #allocation3 [shape = 's32[2]{0}', space=sflag, size = 0x8, scoped, tag = 'scoped memory for tpu_custom_call.1']
    #allocation4 [shape = 's32[2]{0}', space=sflag, size = 0x8, scoped, tag = 'scoped memory for tpu_custom_call.1']
    #allocation5 [shape = 'u8[8192]{0}', space=vmem, size = 0x2000, scoped, tag = 'input window, operand 1, single buffered']
    #allocation6 [shape = 's32[1]{0}', space=sflag, size = 0x4, scoped, tag = 'scoped memory for tpu_custom_call.1']
    #allocation7 [shape = 'u8[32768]{0}', space=vmem, size = 0x8000, scoped, tag = 'input window, operand 3, single buffered']
    #allocation8 [shape = 'u8[8192]{0}', space=vmem, size = 0x2000, scoped, tag = 'output window, operand 0']
    %10 = vsyncpa [#allocation3], 0
    %s11 = scalar_lea.sflag [#allocation3], 1
    %12 = vsyncpa %s11, 0
    %13 = vsyncpa [#allocation6], 0
    %14 = vsyncpa [#allocation4], 0
    %s15 = scalar_lea.sflag [#allocation4], 1
    %16 = vsyncpa %s15, 0
    loop: start=0, step=1, limit=4
    $region2: #{tpu_custom_call.1} parent=1 // loop_pre_header
      _
    $region3: #{tpu_custom_call.1} parent=1 // loop_header
      %s18 = sphi 0, %s22
      %p19 = scmp.ge.s32.totalorder %s18, 4
      %s28 = sphi 0, %s30
      %s31 = sphi 0, %s28
      %s32 = sphi 0, %s31
      %s48 = sphi 0, %s32
      %s52 = sphi 0, %s52
      %s54 = sphi 0, %s52
      %s55 = sphi 0, %s54
      %s69 = sphi 0, %s55
      %s73 = sphi 0, %s73
      %s75 = sphi 0, %s73
      %s76 = sphi 0, %s75
      %s90 = sphi 0, %s76
      %s94 = sphi 0, %s94
      %s96 = sphi 0, %s94
      %s97 = sphi 0, %s96
      %s111 = sphi 0, %s97
      %s115 = sphi 0, %s115
      %s117 = sphi 0, %s115
      %s118 = sphi 0, %s117
      %s132 = sphi 0, %s118
      %s138 = sphi 0, %s140
      %s141 = sphi 0, %s138
      %s142 = sphi 0, %s141
      %s158 = sphi 0, %s142
    $region4: #{tpu_custom_call.1} parent=1 // loop_header_branch
      %21 = sbr.rel (%p19) target = $region8
    $region5: #{tpu_custom_call.1} parent=1 // loop_body
      %s23 = ssub.s32 %s18, 1
      %s24 = ssub.s32 %s18, 2
      %s25 = sadd.s32 %s18, 1
      %s26 = ssub.s32 %s18, %s25
      %p27 = scmp.eq.s32.totalorder %s26, 0
      %s29 = sadd.s32 %s28, 1
      %s30 = scalar_select %p27, %s28, %s29
      %p33 = pneg %p27
      %p34 = scmp.eq.s32.totalorder %s18, 1
      %p35 = por %p33, %p34
      %p36 = scmp.ne.s32.totalorder %s28, %s31
      %p37 = scmp.eq.s32.totalorder %s18, 0
      %p38 = por %p36, %p37
      %p39 = scmp.ne.s32.totalorder %s28, %s31
      %p40 = scmp.eq.s32.totalorder %s23, 1
      %p41 = por %p39, %p40
      %p42 = scmp.ne.s32.totalorder %s31, %s32
      %p43 = scmp.eq.s32.totalorder %s23, 0
      %p44 = por %p42, %p43
      %p45 = scmp.ne.s32.totalorder %s31, %s32
      %p46 = scmp.eq.s32.totalorder %s24, 1
      %p47 = por %p45, %p46
      %p49 = scmp.ne.s32.totalorder %s32, %s48
      %p50 = scmp.eq.s32.totalorder %s24, 0
      %p51 = por %p49, %p50
      %s53 = sadd.s32 %s52, 1
      %p56 = scmp.eq.s32.totalorder %s18, 1
      %p57 = scmp.ne.s32.totalorder %s52, %s54
      %p58 = scmp.eq.s32.totalorder %s18, 0
      %p59 = por %p57, %p58
      %p60 = scmp.ne.s32.totalorder %s52, %s54
      %p61 = scmp.eq.s32.totalorder %s23, 1
      %p62 = por %p60, %p61
      %p63 = scmp.ne.s32.totalorder %s54, %s55
      %p64 = scmp.eq.s32.totalorder %s23, 0
      %p65 = por %p63, %p64
      %p66 = scmp.ne.s32.totalorder %s54, %s55
      %p67 = scmp.eq.s32.totalorder %s24, 1
      %p68 = por %p66, %p67
      %p70 = scmp.ne.s32.totalorder %s55, %s69
      %p71 = scmp.eq.s32.totalorder %s24, 0
      %p72 = por %p70, %p71
      %s74 = sadd.s32 %s73, 1
      %p77 = scmp.eq.s32.totalorder %s18, 1
      %p78 = scmp.ne.s32.totalorder %s73, %s75
      %p79 = scmp.eq.s32.totalorder %s18, 0
      %p80 = por %p78, %p79
      %p81 = scmp.ne.s32.totalorder %s73, %s75
      %p82 = scmp.eq.s32.totalorder %s23, 1
      %p83 = por %p81, %p82
      %p84 = scmp.ne.s32.totalorder %s75, %s76
      %p85 = scmp.eq.s32.totalorder %s23, 0
      %p86 = por %p84, %p85
      %p87 = scmp.ne.s32.totalorder %s75, %s76
      %p88 = scmp.eq.s32.totalorder %s24, 1
      %p89 = por %p87, %p88
      %p91 = scmp.ne.s32.totalorder %s76, %s90
      %p92 = scmp.eq.s32.totalorder %s24, 0
      %p93 = por %p91, %p92
      %s95 = sadd.s32 %s94, 1
      %p98 = scmp.eq.s32.totalorder %s18, 1
      %p99 = scmp.ne.s32.totalorder %s94, %s96
      %p100 = scmp.eq.s32.totalorder %s18, 0
      %p101 = por %p99, %p100
      %p102 = scmp.ne.s32.totalorder %s94, %s96
      %p103 = scmp.eq.s32.totalorder %s23, 1
      %p104 = por %p102, %p103
      %p105 = scmp.ne.s32.totalorder %s96, %s97
      %p106 = scmp.eq.s32.totalorder %s23, 0
      %p107 = por %p105, %p106
      %p108 = scmp.ne.s32.totalorder %s96, %s97
      %p109 = scmp.eq.s32.totalorder %s24, 1
      %p110 = por %p108, %p109
      %p112 = scmp.ne.s32.totalorder %s97, %s111
      %p113 = scmp.eq.s32.totalorder %s24, 0
      %p114 = por %p112, %p113
      %s116 = sadd.s32 %s115, 1
      %p119 = scmp.eq.s32.totalorder %s18, 1
      %p120 = scmp.ne.s32.totalorder %s115, %s117
      %p121 = scmp.eq.s32.totalorder %s18, 0
      %p122 = por %p120, %p121
      %p123 = scmp.ne.s32.totalorder %s115, %s117
      %p124 = scmp.eq.s32.totalorder %s23, 1
      %p125 = por %p123, %p124
      %p126 = scmp.ne.s32.totalorder %s117, %s118
      %p127 = scmp.eq.s32.totalorder %s23, 0
      %p128 = por %p126, %p127
      %p129 = scmp.ne.s32.totalorder %s117, %s118
      %p130 = scmp.eq.s32.totalorder %s24, 1
      %p131 = por %p129, %p130
      %p133 = scmp.ne.s32.totalorder %s118, %s132
      %p134 = scmp.eq.s32.totalorder %s24, 0
      %p135 = por %p133, %p134
      %s136 = ssub.s32 %s18, %s25
      %p137 = scmp.eq.s32.totalorder %s136, 0
      %s139 = sadd.s32 %s138, 1
      %s140 = scalar_select %p137, %s138, %s139
      %p143 = pneg %p137
      %p144 = scmp.eq.s32.totalorder %s18, 1
      %p145 = por %p143, %p144
      %p146 = scmp.ne.s32.totalorder %s138, %s141
      %p147 = scmp.eq.s32.totalorder %s18, 0
      %p148 = por %p146, %p147
      %p149 = scmp.ne.s32.totalorder %s138, %s141
      %p150 = scmp.eq.s32.totalorder %s23, 1
      %p151 = por %p149, %p150
      %p152 = scmp.ne.s32.totalorder %s141, %s142
      %p153 = scmp.eq.s32.totalorder %s23, 0
      %p154 = por %p152, %p153
      %p155 = scmp.ne.s32.totalorder %s141, %s142
      %p156 = scmp.eq.s32.totalorder %s24, 1
      %p157 = por %p155, %p156
      %p159 = scmp.ne.s32.totalorder %s142, %s158
      %p160 = scmp.eq.s32.totalorder %s24, 0
      %p161 = por %p159, %p160
      %p162 = scmp.le.s32.totalorder 1, %s18
      %p163 = scmp.lt.s32.totalorder %s18, 3
      %p164 = pnand %p162, %p163
      %p165 = pneg %p164
      // Predicated region
      $region9: #{tpu_custom_call.1} parent=5 // pred_check
        _
      $region10: #{tpu_custom_call.1} parent=5 // pred_check_branch
        %167 = sbr.rel (%p164) target = $region12
      $region11: #{tpu_custom_call.1} parent=5 // pred_region
        %s168 = ssub.s32 %s18, 1
        // Predicated region
        $region13: #{tpu_custom_call.1} parent=11 // pred_check
          %p169 = pneg %p65
        $region14: #{tpu_custom_call.1} parent=11 // pred_check_branch
          %171 = sbr.rel (%p169) target = $region16
        $region15: #{tpu_custom_call.1} parent=11 // pred_region
          %s173 = ssub.s32 256, 256
          %174 = vsyncadd [#allocation6], %s173
          %s175 = sshll.u32 [#allocation5], 4
          %s176 = int_to_ptr.vmem [resolvable:$true] %s175
          %181 = dma.hbm_to_vmem [thread:$0]  %s1, 256, %s176, [#allocation6], 64, 64, 4
        $region16: #{tpu_custom_call.1} parent=11 // pred_fallthru
          _
        // Predicated region
        $region17: #{tpu_custom_call.1} parent=11 // pred_check
          %p182 = pneg %p86
        $region18: #{tpu_custom_call.1} parent=11 // pred_check_branch
          %184 = sbr.rel (%p182) target = $region20
        $region19: #{tpu_custom_call.1} parent=11 // pred_region
          _
        $region20: #{tpu_custom_call.1} parent=11 // pred_fallthru
          _
        // Predicated region
        $region21: #{tpu_custom_call.1} parent=11 // pred_check
          %p185 = pneg %p107
        $region22: #{tpu_custom_call.1} parent=11 // pred_check_branch
          %187 = sbr.rel (%p185) target = $region24
        $region23: #{tpu_custom_call.1} parent=11 // pred_region
          %s189 = ssub.s32 1024, 1024
          %190 = vsyncadd [#allocation6], %s189
          %s191 = sshll.u32 [#allocation7], 4
          %s192 = int_to_ptr.vmem [resolvable:$true] %s191
          %197 = dma.hbm_to_vmem [thread:$0]  %s3, 1024, %s192, [#allocation6], 64, 64, 4
        $region24: #{tpu_custom_call.1} parent=11 // pred_fallthru
          _
        // Predicated region
        $region25: #{tpu_custom_call.1} parent=11 // pred_check
          %p198 = pneg %p128
        $region26: #{tpu_custom_call.1} parent=11 // pred_check_branch
          %200 = sbr.rel (%p198) target = $region28
        $region27: #{tpu_custom_call.1} parent=11 // pred_region
          _
        $region28: #{tpu_custom_call.1} parent=11 // pred_fallthru
          _
      $region12: #{tpu_custom_call.1} parent=5 // pred_fallthru
        _
      %p201 = scmp.lt.s32.totalorder %s18, 2
      // Predicated region
      $region29: #{tpu_custom_call.1} parent=5 // pred_check
        %p202 = pneg %p201
      $region30: #{tpu_custom_call.1} parent=5 // pred_check_branch
        %204 = sbr.rel (%p202) target = $region32
      $region31: #{tpu_custom_call.1} parent=5 // pred_region
        // Predicated region
        $region33: #{tpu_custom_call.1} parent=31 // pred_check
          %p205 = pneg %p38
        $region34: #{tpu_custom_call.1} parent=31 // pred_check_branch
          %207 = sbr.rel (%p205) target = $region36
        $region35: #{tpu_custom_call.1} parent=31 // pred_region
          %s208 = sand.u32 %s28, 1
          %s209 = scalar_lea.sflag [#allocation3], %s208
          %s210 = sand.u32 %s28, 1
          %s211 = smul.addr %s210, 4
          %s212 = scalar_lea.vmem [#allocation2], %s211
          %s214 = ssub.s32 64, 64
          %215 = vsyncadd %s209, %s214
          %s216 = smul.addr %s18, 64
          %s217 = scalar_lea.hbm %s0, %s216
          %s219 = sshll.u32 %s212, 4
          %s220 = int_to_ptr.vmem [resolvable:$true] %s219
          %222 = dma.hbm_to_vmem [thread:$0]  %s217, 64, %s220, %s209
        $region36: #{tpu_custom_call.1} parent=31 // pred_fallthru
          _
      $region32: #{tpu_custom_call.1} parent=5 // pred_fallthru
        _
      %p223 = scmp.le.s32.totalorder 1, %s18
      %p224 = scmp.lt.s32.totalorder %s18, 3
      %p225 = pnand %p223, %p224
      %p226 = pneg %p225
      // Predicated region
      $region37: #{tpu_custom_call.1} parent=5 // pred_check
        _
      $region38: #{tpu_custom_call.1} parent=5 // pred_check_branch
        %228 = sbr.rel (%p225) target = $region40
      $region39: #{tpu_custom_call.1} parent=5 // pred_region
        %s229 = ssub.s32 %s18, 1
        %s230 = sand.u32 %s31, 1
        %s231 = scalar_lea.sflag [#allocation3], %s230
        %s232 = sand.u32 %s31, 1
        %s233 = smul.addr %s232, 4
        %s234 = scalar_lea.vmem [#allocation2], %s233
        // Predicated region
        $region41: #{tpu_custom_call.1} parent=39 // pred_check
          %p235 = pneg %p44
        $region42: #{tpu_custom_call.1} parent=39 // pred_check_branch
          %237 = sbr.rel (%p235) target = $region44
        $region43: #{tpu_custom_call.1} parent=39 // pred_region
          %238 = dma.done %s231, 64
        $region44: #{tpu_custom_call.1} parent=39 // pred_fallthru
          _
        // Predicated region
        $region45: #{tpu_custom_call.1} parent=39 // pred_check
          %p239 = pneg %p65
        $region46: #{tpu_custom_call.1} parent=39 // pred_check_branch
          %241 = sbr.rel (%p239) target = $region48
        $region47: #{tpu_custom_call.1} parent=39 // pred_region
          %242 = dma.done [#allocation6], 256
        $region48: #{tpu_custom_call.1} parent=39 // pred_fallthru
          _
        // Predicated region
        $region49: #{tpu_custom_call.1} parent=39 // pred_check
          %p243 = pneg %p107
        $region50: #{tpu_custom_call.1} parent=39 // pred_check_branch
          %245 = sbr.rel (%p243) target = $region52
        $region51: #{tpu_custom_call.1} parent=39 // pred_region
          %246 = dma.done [#allocation6], 1024
        $region52: #{tpu_custom_call.1} parent=39 // pred_fallthru
          _
        %s247 = sand.u32 %s31, 1
        %s248 = scalar_lea.sflag [#allocation3], %s247
        %s249 = sand.u32 %s31, 1
        %s250 = smul.addr %s249, 4
        %s251 = scalar_lea.vmem [#allocation2], %s250
        %p252 = pneg %p44
        %p253 = pneg %p41
        %p254 = pneg %p65
        %p255 = pneg %p62
        %p256 = pneg %p86
        %p257 = pneg %p83
        %p258 = pneg %p107
        %p259 = pneg %p104
        %p260 = pneg %p128
        %p261 = pneg %p125
        %p262 = pneg %p154
        %p263 = pneg %p151
        %s264 = sand.u32 %s141, 1
        %s265 = scalar_lea.sflag [#allocation4], %s264
        %s266 = sand.u32 %s141, 1
        %s267 = smul.addr %s266, 8
        %s268 = scalar_lea.vmem [#allocation8], %s267
        %v270 = vld [vmem:[%s234] sm:$0xf]
        %v271 = vld [vmem:[#allocation5] sm:$0xf]
        %v272 = vld [vmem:[#allocation5 + $0x4] sm:$0xf]
        %v273 = vld [vmem:[#allocation5 + $0x8] sm:$0xf]
        %v274 = vld [vmem:[#allocation5 + $0xc] sm:$0xf]
        %v275 = vld [vmem:[%s2] sm:$0x1]
        %v277 = vlaneseq
        %v278 = vshrl.u32 %v277, 7
        %v279 = vsub.s32 0, %v278
        %v280 = vrot.slane %v275, %v279
        %v286 = vunpack.c.l.b16 %v271
        %v287 = vunpack.c.l.b16 %v272
        %v288 = vunpack.c.l.b16 %v273
        %v289 = vunpack.c.l.b16 %v274
        %v290 = vpack.c.b16 %v287, %v286
        %v291 = vpack.c.b16 %v289, %v288
        %vm294 = vcmask 261120
        %v296 = vsel %vm294, %v270, 0
        %298 = vmatprep.subr.bf16.mxu0 0
        %299 = vmatpush1.bf16.msra.mxu0 %v290
        %300 = vmatprep.subr.bf16.mxu0 0
        %301 = vmatpush1.bf16.msra.mxu0 %v291
        %302 = vmatprep.subr.bf16.mxu0 0
        %303 = vmatpush1.bf16.msra.mxu0 0
        %304 = vmatprep.subr.bf16.mxu0 0
        %305 = vmatpush1.bf16.msra.mxu0 0
        %306 = vmatprep.subr.bf16.mxu0 0
        %307 = vmatpush1.bf16.msra.mxu0 0
        %308 = vmatprep.subr.bf16.mxu0 0
        %309 = vmatpush1.bf16.msra.mxu0 0
        %310 = vmatprep.subr.bf16.mxu0 0
        %311 = vmatpush1.bf16.msra.mxu0 0
        %312 = vmatprep.subr.bf16.mxu0 0
        %313 = vmatpush1.bf16.msra.mxu0 0
        %314 = vmatprep.subr.bf16.mxu0 0
        %315 = vmatpush1.bf16.msra.mxu0 0
        %316 = vmatprep.subr.bf16.mxu0 0
        %317 = vmatpush1.bf16.msra.mxu0 0
        %318 = vmatprep.subr.bf16.mxu0 0
        %319 = vmatpush1.bf16.msra.mxu0 0
        %320 = vmatprep.subr.bf16.mxu0 0
        %321 = vmatpush1.bf16.msra.mxu0 0
        %322 = vmatprep.subr.bf16.mxu0 0
        %323 = vmatpush1.bf16.msra.mxu0 0
        %324 = vmatprep.subr.bf16.mxu0 0
        %325 = vmatpush1.bf16.msra.mxu0 0
        %326 = vmatprep.subr.bf16.mxu0 0
        %327 = vmatpush1.bf16.msra.mxu0 0
        %328 = vmatprep.subr.bf16.mxu0 0
        %329 = vmatpush1.bf16.msra.mxu0 0
        %330 = vmatprep.mubr.bf16.mxu0 0
        %331 = vmatmul.mubr.bf16.gmra.mrb[0].mxu0 %v296
        %v332 = vpop.f32.mrb[0].mxu0
        %v333 = vadd.f32 %v280, %v332
        %v334 = vpop.f32.mrb[0].mxu0
        %v335 = vpop.f32.mrb[0].mxu0
        %v336 = vpop.f32.mrb[0].mxu0
        %337 = vdwg.mxu0
        %v338 = vsub.f32 0.0, %v333
        %v339 = vmul.f32 %v338, 1.442695
        %v340 = vpow.pop %v339
        %v341 = vadd.f32 %v340, 1.0
        %v342 = vrcp.pop %v341
        %v343 = vmul.f32 %v333, %v342
        %v344 = vpack.c.bf16 %v343, %v343
        %v345 = vld [vmem:[#allocation7] sm:$0xf]
        %v346 = vld [vmem:[#allocation7 + $0x4] sm:$0xf]
        %v347 = vld [vmem:[#allocation7 + $0x8] sm:$0xf]
        %v348 = vld [vmem:[#allocation7 + $0xc] sm:$0xf]
        %v349 = vld [vmem:[#allocation7 + $0x10] sm:$0xf]
        %v350 = vld [vmem:[#allocation7 + $0x14] sm:$0xf]
        %v351 = vld [vmem:[#allocation7 + $0x18] sm:$0xf]
        %v352 = vld [vmem:[#allocation7 + $0x1c] sm:$0xf]
        %v353 = vld [vmem:[#allocation7 + $0x20] sm:$0xf]
        %v354 = vld [vmem:[#allocation7 + $0x24] sm:$0xf]
        %v355 = vld [vmem:[#allocation7 + $0x28] sm:$0xf]
        %v356 = vld [vmem:[#allocation7 + $0x2c] sm:$0xf]
        %v357 = vld [vmem:[#allocation7 + $0x30] sm:$0xf]
        %v358 = vld [vmem:[#allocation7 + $0x34] sm:$0xf]
        %v359 = vld [vmem:[#allocation7 + $0x38] sm:$0xf]
        %v360 = vld [vmem:[#allocation7 + $0x3c] sm:$0xf]
        %v361 = vld [vmem:[%s4] sm:$0x1]
        %v363 = vlaneseq
        %v364 = vshrl.u32 %v363, 7
        %v365 = vsub.s32 0, %v364
        %v366 = vrot.slane %v361, %v365
        %v384 = vunpack.c.l.b16 %v345
        %v385 = vunpack.c.l.b16 %v346
        %v386 = vunpack.c.l.b16 %v347
        %v387 = vunpack.c.l.b16 %v348
        %v388 = vunpack.c.l.b16 %v349
        %v389 = vunpack.c.l.b16 %v350
        %v390 = vunpack.c.l.b16 %v351
        %v391 = vunpack.c.l.b16 %v352
        %v392 = vunpack.c.l.b16 %v353
        %v393 = vunpack.c.l.b16 %v354
        %v394 = vunpack.c.l.b16 %v355
        %v395 = vunpack.c.l.b16 %v356
        %v396 = vunpack.c.l.b16 %v357
        %v397 = vunpack.c.l.b16 %v358
        %v398 = vunpack.c.l.b16 %v359
        %v399 = vunpack.c.l.b16 %v360
        %v400 = vpack.c.b16 %v385, %v384
        %v401 = vpack.c.b16 %v387, %v386
        %v402 = vpack.c.b16 %v389, %v388
        %v403 = vpack.c.b16 %v391, %v390
        %v404 = vpack.c.b16 %v393, %v392
        %v405 = vpack.c.b16 %v395, %v394
        %v406 = vpack.c.b16 %v397, %v396
        %v407 = vpack.c.b16 %v399, %v398
        %416 = vmatprep.subr.bf16.mxu0 0
        %417 = vmatpush1.bf16.msra.mxu0 %v400
        %418 = vmatprep.subr.bf16.mxu0 0
        %419 = vmatpush1.bf16.msra.mxu0 %v401
        %420 = vmatprep.subr.bf16.mxu0 0
        %421 = vmatpush1.bf16.msra.mxu0 %v402
        %422 = vmatprep.subr.bf16.mxu0 0
        %423 = vmatpush1.bf16.msra.mxu0 %v403
        %424 = vmatprep.subr.bf16.mxu0 0
        %425 = vmatpush1.bf16.msra.mxu0 %v404
        %426 = vmatprep.subr.bf16.mxu0 0
        %427 = vmatpush1.bf16.msra.mxu0 %v405
        %428 = vmatprep.subr.bf16.mxu0 0
        %429 = vmatpush1.bf16.msra.mxu0 %v406
        %430 = vmatprep.subr.bf16.mxu0 0
        %431 = vmatpush1.bf16.msra.mxu0 %v407
        %432 = vmatprep.subr.bf16.mxu0 0
        %433 = vmatpush1.bf16.msra.mxu0 0
        %434 = vmatprep.subr.bf16.mxu0 0
        %435 = vmatpush1.bf16.msra.mxu0 0
        %436 = vmatprep.subr.bf16.mxu0 0
        %437 = vmatpush1.bf16.msra.mxu0 0
        %438 = vmatprep.subr.bf16.mxu0 0
        %439 = vmatpush1.bf16.msra.mxu0 0
        %440 = vmatprep.subr.bf16.mxu0 0
        %441 = vmatpush1.bf16.msra.mxu0 0
        %442 = vmatprep.subr.bf16.mxu0 0
        %443 = vmatpush1.bf16.msra.mxu0 0
        %444 = vmatprep.subr.bf16.mxu0 0
        %445 = vmatpush1.bf16.msra.mxu0 0
        %446 = vmatprep.subr.bf16.mxu0 0
        %447 = vmatpush1.bf16.msra.mxu0 0
        %448 = vmatprep.mubr.bf16.mxu0 0
        %449 = vmatmul.mubr.bf16.gmra.mrb[0].mxu0 %v344
        %v450 = vpop.f32.mrb[0].mxu0
        %v451 = vadd.f32 %v366, %v450
        %v452 = vpop.f32.mrb[0].mxu0
        %v453 = vpop.f32.mrb[0].mxu0
        %v454 = vpop.f32.mrb[0].mxu0
        %455 = vdwg.mxu0
        %456 = vst [vmem:[%s268] sm:$0xff] %v451
        %s457 = sand.u32 %s141, 1
        %s458 = scalar_lea.sflag [#allocation4], %s457
        %s459 = sand.u32 %s141, 1
        %s460 = smul.addr %s459, 8
        %s461 = scalar_lea.vmem [#allocation8], %s460
        // Predicated region
        $region53: #{tpu_custom_call.1} parent=39 // pred_check
          %p462 = pneg %p151
        $region54: #{tpu_custom_call.1} parent=39 // pred_check_branch
          %464 = sbr.rel (%p462) target = $region56
        $region55: #{tpu_custom_call.1} parent=39 // pred_region
          %s466 = ssub.s32 128, 128
          %467 = vsyncadd %s458, %s466
          %s468 = smul.addr %s23, 128
          %s469 = scalar_lea.hbm %s5, %s468
          %s471 = sshll.u32 %s461, 4
          %s472 = int_to_ptr.vmem [resolvable:$true] %s471
          %474 = dma.vmem_to_hbm [thread:$0]  %s472, 128, %s469, %s458
        $region56: #{tpu_custom_call.1} parent=39 // pred_fallthru
          _
      $region40: #{tpu_custom_call.1} parent=5 // pred_fallthru
        _
      %p475 = scmp.le.s32.totalorder 2, %s18
      // Predicated region
      $region57: #{tpu_custom_call.1} parent=5 // pred_check
        %p476 = pneg %p475
      $region58: #{tpu_custom_call.1} parent=5 // pred_check_branch
        %478 = sbr.rel (%p476) target = $region60
      $region59: #{tpu_custom_call.1} parent=5 // pred_region
        %s479 = ssub.s32 %s18, 2
        // Predicated region
        $region61: #{tpu_custom_call.1} parent=59 // pred_check
          %p480 = pneg %p157
        $region62: #{tpu_custom_call.1} parent=59 // pred_check_branch
          %482 = sbr.rel (%p480) target = $region64
        $region63: #{tpu_custom_call.1} parent=59 // pred_region
          %s483 = sand.u32 %s142, 1
          %s484 = scalar_lea.sflag [#allocation4], %s483
          %s485 = sand.u32 %s142, 1
          %s486 = smul.addr %s485, 8
          %s487 = scalar_lea.vmem [#allocation8], %s486
          %488 = dma.done %s484, 128
        $region64: #{tpu_custom_call.1} parent=59 // pred_fallthru
          _
      $region60: #{tpu_custom_call.1} parent=5 // pred_fallthru
        _
    $region6: #{tpu_custom_call.1} parent=1 // loop_footer
      %s22 = sadd.s32 1, %s18
    $region7: #{tpu_custom_call.1} parent=1 // loop_footer_branch
      %17 = sbr.rel target = $region3
    $region8: #{tpu_custom_call.1} parent=1 // loop_exit
      _
    %489 = vsyncpa [#allocation3], 1
    %s490 = scalar_lea.sflag [#allocation3], 1
    %491 = vsyncpa %s490, 1
    %492 = vsyncpa [#allocation6], 1
    %493 = vsyncpa [#allocation4], 1
    %s494 = scalar_lea.sflag [#allocation4], 1
    %495 = vsyncpa %s494, 1

</llo_original>
